<compile_context>
chip_gen: v7x
topology: tpu7x:2x2x1
jax: 0.10.0
libtpu: 0.0.40
codegen_flags: <defaults>
</compile_context>

<pallas_src>
import functools

import jax
import jax.numpy as jnp
from jax.experimental import pallas as pl
from jax.experimental.pallas import tpu as pltpu

HIDDEN = 128
BN_EPS = 1e-5
LRELU_SLOPE = 0.2
MAX_TB = 2048                       # largest batch tile considered
H_CACHE_BUDGET = 24 * 1024 * 1024   # bytes of VMEM allowed for the h cache


def _round_up(n, m):
    return ((n + m - 1) // m) * m


def _colsum_mxu(row_ones, mat):
    """(1, TB) @ (TB, H) -> (1, H) per-feature column sum on the MXU."""
    return jax.lax.dot_general(
        row_ones, mat, (((1,), (0,)), ((), ())),
        preferred_element_type=jnp.float32)


def _fc2_row(w2, act):
    """MXU contraction (1,128) x (TB,128) over the 128 axis -> (1, TB)."""
    return jax.lax.dot_general(
        w2, act, (((1,), (1,)), ((), ())),
        preferred_element_type=jnp.float32)


def _bn_scale_shift(sum_row, sumsq_row, gamma, beta, true_batch):
    inv_n = jnp.float32(1.0 / true_batch)
    mean = sum_row * inv_n
    var = jnp.maximum(sumsq_row * inv_n - mean * mean, 0.0)
    scale = gamma * jax.lax.rsqrt(var + BN_EPS)
    shift = beta - mean * scale
    return scale, shift


# --------------------------------------------------------------------------- #
# Fast path: whole (padded) batch fits in one tile -> single grid step.
# --------------------------------------------------------------------------- #
def _single_tile_kernel(x_ref, w1_ref, gamma_ref, beta_ref, w2_ref, b2_ref,
                        out_ref, *, true_batch):
    h = jnp.dot(x_ref[...], w1_ref[...], preferred_element_type=jnp.float32)
    ones_row = jnp.ones((1, h.shape[0]), jnp.float32)
    s = _colsum_mxu(ones_row, h)
    ss = _colsum_mxu(ones_row, h * h)
    scale, shift = _bn_scale_shift(s, ss, gamma_ref[...], beta_ref[...],
                                   true_batch)
    hb = h * scale + shift
    act = jnp.where(hb >= 0.0, hb, LRELU_SLOPE * hb)
    logits = _fc2_row(w2_ref[...], act) + b2_ref[0, 0]
    out_ref[...] = jax.nn.sigmoid(logits)           # (1, B_pad), lane-dense


# --------------------------------------------------------------------------- #
# Tiled path: grid = (pass, batch tile).  Pass 0 computes fc1, caches h and
# accumulates exact full-batch BN statistics; pass 1 applies BN / activation /
# fc2 / sigmoid and stores the lane-dense output row.
# --------------------------------------------------------------------------- #
def _tiled_kernel(x_ref, w1_ref, gamma_ref, beta_ref, w2_ref, b2_ref,
                  out_ref,
                  sum_ref, sumsq_ref, scale_ref, shift_ref, h_ref=None,
                  *, true_batch, cache_h):
    p = pl.program_id(0)          # 0: statistics pass, 1: output pass
    i = pl.program_id(1)          # batch tile index
    nb = pl.num_programs(1)

    # ------------- pass 0: fc1, h cache, full-batch BN statistics ----------
    @pl.when(p == 0)
    def _stats_pass():
        h = jnp.dot(x_ref[...], w1_ref[...],
                    preferred_element_type=jnp.float32)
        if cache_h:
            h_ref[i] = h                      # cache for pass 1 (no recompute)

        @pl.when(i == 0)
        def _init():
            sum_ref[...] = jnp.zeros_like(sum_ref)
            sumsq_ref[...] = jnp.zeros_like(sumsq_ref)

        # Column reductions on the (mostly idle) MXU instead of VPU/XLU.
        ones_row = jnp.ones((1, h.shape[0]), jnp.float32)
        sum_ref[...] += _colsum_mxu(ones_row, h)
        sumsq_ref[...] += _colsum_mxu(ones_row, h * h)

        @pl.when(i == nb - 1)
        def _finalize():
            scale, shift = _bn_scale_shift(sum_ref[...], sumsq_ref[...],
                                           gamma_ref[...], beta_ref[...],
                                           true_batch)
            scale_ref[...] = scale
            shift_ref[...] = shift

    # ------------- pass 1: normalize, activate, fc2, sigmoid ----------------
    @pl.when(p == 1)
    def _output_pass():
        if cache_h:
            h = h_ref[i]
        else:
            h = jnp.dot(x_ref[...], w1_ref[...],
                        preferred_element_type=jnp.float32)
        hb = h * scale_ref[...] + shift_ref[...]          # fused BN scale/shift
        act = jnp.where(hb >= 0.0, hb, LRELU_SLOPE * hb)  # LeakyReLU(0.2)
        logits = _fc2_row(w2_ref[...], act) + b2_ref[0, 0]
        out_ref[...] = jax.nn.sigmoid(logits)             # (1, TB), lane-dense


def discriminator_forward(x, params):
    """x: (B, n_cities) float32  ->  (B, 1) float32."""
    w1, gamma, beta, w2, b2 = (params["w1"], params["gamma"], params["beta"],
                               params["w2"], params["b2"])
    B, n_cities = x.shape

    # Pad the batch to a lane multiple.  Zero-padding is exact: with no fc1
    # bias the padded rows give h == 0 (no contribution to the BN sums) and
    # the true B is used as the divisor.
    B_pad = _round_up(B, 128)
    if B_pad != B:
        x = jnp.pad(x, ((0, B_pad - B), (0, 0)))

    weight_specs = [
        pl.BlockSpec((n_cities, HIDDEN), lambda p, i: (0, 0)),   # w1 (resident)
        pl.BlockSpec((1, HIDDEN), lambda p, i: (0, 0)),          # gamma
        pl.BlockSpec((1, HIDDEN), lambda p, i: (0, 0)),          # beta
        pl.BlockSpec((1, HIDDEN), lambda p, i: (0, 0)),          # w2 row
        pl.BlockSpec(memory_space=pltpu.MemorySpace.SMEM),       # b2 scalar
    ]

    # ---------------- single-step fast path (small / moderate batch) --------
    if B_pad <= MAX_TB:
        kernel = functools.partial(_single_tile_kernel, true_batch=B)
        out_row = pl.pallas_call(
            kernel,
            out_shape=jax.ShapeDtypeStruct((1, B_pad), jnp.float32),
            grid_spec=pltpu.PrefetchScalarGridSpec(
                num_scalar_prefetch=0,
                grid=(1,),
                in_specs=[
                    pl.BlockSpec((B_pad, n_cities), lambda i: (0, 0)),
                    pl.BlockSpec((n_cities, HIDDEN), lambda i: (0, 0)),
                    pl.BlockSpec((1, HIDDEN), lambda i: (0, 0)),
                    pl.BlockSpec((1, HIDDEN), lambda i: (0, 0)),
                    pl.BlockSpec((1, HIDDEN), lambda i: (0, 0)),
                    pl.BlockSpec(memory_space=pltpu.MemorySpace.SMEM),
                ],
                out_specs=pl.BlockSpec((1, B_pad), lambda i: (0, 0)),
            ),
            compiler_params=pltpu.CompilerParams(
                dimension_semantics=("arbitrary",)),
        )(x, w1, gamma, beta, w2, b2)
        return out_row[0, :B].reshape(B, 1)

    # ---------------- tiled two-pass path ------------------------------------
    for cand in (2048, 1024, 512, 256, 128):
        if B_pad % cand == 0:
            TB = cand
            break
    nb = B_pad // TB

    h_cache_bytes = B_pad * HIDDEN * 4
    cache_h = h_cache_bytes <= H_CACHE_BUDGET

    scratch_shapes = [
        pltpu.VMEM((1, HIDDEN), jnp.float32),   # sum
        pltpu.VMEM((1, HIDDEN), jnp.float32),   # sum of squares
        pltpu.VMEM((1, HIDDEN), jnp.float32),   # fused BN scale
        pltpu.VMEM((1, HIDDEN), jnp.float32),   # fused BN shift
    ]
    if cache_h:
        scratch_shapes.append(pltpu.VMEM((nb, TB, HIDDEN), jnp.float32))
        # Pass 1 does not need x: pin its block to 0 so it is not re-fetched.
        x_index_map = lambda p, i: (i * (1 - p), 0)
    else:
        x_index_map = lambda p, i: (i, 0)

    kernel = functools.partial(_tiled_kernel, true_batch=B, cache_h=cache_h)

    # Rough VMEM estimate (double-buffered x/out + resident weights + cache).
    est_bytes = (2 * TB * n_cities + 2 * n_cities * HIDDEN
                 + 8 * HIDDEN + 4 * TB) * 4
    est_bytes += h_cache_bytes if cache_h else 0
    vmem_limit = int(min(max(2 * est_bytes, 32 * 1024 * 1024),
                         64 * 1024 * 1024))

    out_row = pl.pallas_call(
        kernel,
        out_shape=jax.ShapeDtypeStruct((1, B_pad), jnp.float32),
        grid_spec=pltpu.PrefetchScalarGridSpec(
            num_scalar_prefetch=0,
            grid=(2, nb),                                         # (pass, tile)
            in_specs=[pl.BlockSpec((TB, n_cities), x_index_map)] + weight_specs,
            # Pass 0 collapses onto output block 0 and never writes it, so no
            # HBM writeback happens until pass 1 actually produces results.
            out_specs=pl.BlockSpec((1, TB), lambda p, i: (0, i * p)),
            scratch_shapes=scratch_shapes,
        ),
        # Both grid axes carry state in scratch (cross-tile BN accumulation,
        # pass0 -> pass1 h cache and scale/shift), so they stay sequential.
        compiler_params=pltpu.CompilerParams(
            dimension_semantics=("arbitrary", "arbitrary"),
            vmem_limit_bytes=vmem_limit),
    )(x, w1, gamma, beta, w2, b2)

    return out_row[0, :B].reshape(B, 1)


def init_params(key, n_cities):
    """Synthetic init mirroring the PyTorch module's parameter shapes.

    Kernel-friendly layouts:
      w1: (n_cities, 128)  -- transposed nn.Linear(n_cities, 128).weight
      w2: (1, 128)         -- same layout as nn.Linear(128, 1).weight
    fc1's bias is omitted on purpose: under training-mode BatchNorm it is a
    mathematical no-op (cancelled by the batch-mean subtraction).
    """
    k1, k2, k3 = jax.random.split(key, 3)
    bound1 = 1.0 / jnp.sqrt(jnp.float32(n_cities))
    bound2 = 1.0 / jnp.sqrt(jnp.float32(HIDDEN))
    w1 = jax.random.uniform(k1, (n_cities, HIDDEN), jnp.float32, -bound1, bound1)
    w2 = jax.random.uniform(k2, (1, HIDDEN), jnp.float32, -bound2, bound2)
    b2 = jax.random.uniform(k3, (1, 1), jnp.float32, -bound2, bound2)
    gamma = jnp.ones((1, HIDDEN), jnp.float32)   # BatchNorm1d default init
    beta = jnp.zeros((1, HIDDEN), jnp.float32)
    return {"w1": w1, "gamma": gamma, "beta": beta, "w2": w2, "b2": b2}


def _reference(x, params):
    """Pure-JAX reference of the PyTorch forward (training-mode BatchNorm)."""
    h = x @ params["w1"]                      # fc1 bias omitted (cancels under BN)
    mean = jnp.mean(h, axis=0, keepdims=True)
    var = jnp.mean((h - mean) ** 2, axis=0, keepdims=True)
    hb = (h - mean) * jax.lax.rsqrt(var + BN_EPS) * params["gamma"] + params["beta"]
    act = jnp.where(hb >= 0.0, hb, LRELU_SLOPE * hb)
    logits = act @ params["w2"].T + params["b2"]
    return jax.nn.sigmoid(logits)


if __name__ == "__main__":
    n_cities = 32
    batch = 8

    key = jax.random.PRNGKey(0)
    kx, kp, kx2 = jax.random.split(key, 3)
    params = init_params(kp, n_cities)

    # Small batch -> single-step fast path.
    x = jax.random.normal(kx, (batch, n_cities), dtype=jnp.float32)
    out = jax.block_until_ready(discriminator_forward(x, params))
    assert out.shape == (batch, 1)
    assert bool(jnp.all(jnp.isfinite(out)))
    assert bool(jnp.all((out >= 0.0) & (out <= 1.0)))
    ref = _reference(x, params)
    assert bool(jnp.allclose(out, ref, rtol=1e-4, atol=1e-5)), (
        "small-batch max abs err %e" % float(jnp.max(jnp.abs(out - ref))))

    # Larger batch -> tiled two-pass path with the VMEM h cache (TB=2048, nb=2).
    big_batch = 4096
    x2 = jax.random.normal(kx2, (big_batch, n_cities), dtype=jnp.float32)
    out2 = jax.block_until_ready(discriminator_forward(x2, params))
    assert out2.shape == (big_batch, 1)
    ref2 = _reference(x2, params)
    assert bool(jnp.allclose(out2, ref2, rtol=1e-4, atol=5e-5)), (
        "big-batch max abs err %e" % float(jnp.max(jnp.abs(out2 - ref2))))

    print("KERNEL_OK")
</pallas_src>

<mosaic_0001>
module attributes {stable_mosaic.version = 11 : i64} {
  func.func @_single_tile_kernel(%arg0: i32, %arg1: memref<128x32xf32, #tpu.memory_space<vmem>>, %arg2: memref<32x128xf32, #tpu.memory_space<vmem>>, %arg3: memref<1x128xf32, #tpu.memory_space<vmem>>, %arg4: memref<1x128xf32, #tpu.memory_space<vmem>>, %arg5: memref<1x128xf32, #tpu.memory_space<vmem>>, %arg6: memref<1x1xf32, #tpu.memory_space<smem>>, %arg7: memref<1x128xf32, #tpu.memory_space<vmem>>) attributes {dimension_semantics = [#tpu.dimension_semantics<arbitrary>], iteration_bounds = array<i64: 1>, scalar_prefetch = 0 : i64, scratch_operands = 0 : i64, tpu.core_type = #tpu.core_type<tc>, window_params = [{pipeline_mode = #tpu.pipeline_mode<synchronous>, transform_indices = @transform_0, window_bounds = array<i64: 128, 32>}, {pipeline_mode = #tpu.pipeline_mode<synchronous>, transform_indices = @transform_1, window_bounds = array<i64: 32, 128>}, {pipeline_mode = #tpu.pipeline_mode<synchronous>, transform_indices = @transform_2, window_bounds = array<i64: 1, 128>}, {pipeline_mode = #tpu.pipeline_mode<synchronous>, transform_indices = @transform_3, window_bounds = array<i64: 1, 128>}, {pipeline_mode = #tpu.pipeline_mode<synchronous>, transform_indices = @transform_4, window_bounds = array<i64: 1, 128>}, {transform_indices = @transform_5, window_bounds = array<i64: 1, 1>}, {pipeline_mode = #tpu.pipeline_mode<synchronous>, transform_indices = @transform_6, window_bounds = array<i64: 1, 128>}]} {
    %c0 = arith.constant 0 : index
    %c0_0 = arith.constant 0 : index
    %0 = vector.load %arg1[%c0, %c0_0] : memref<128x32xf32, #tpu.memory_space<vmem>>, vector<128x32xf32>
    %c0_1 = arith.constant 0 : index
    %c0_2 = arith.constant 0 : index
    %1 = vector.load %arg2[%c0_1, %c0_2] : memref<32x128xf32, #tpu.memory_space<vmem>>, vector<32x128xf32>
    %cst = arith.constant dense<0.000000e+00> : vector<128x128xf32>
    %2 = tpu.matmul %0, %1, %cst {dimension_numbers = #tpu.dot_dimension_numbers<[1], [0], [0], [1], [0, 0, 1, 1], [], []>} : vector<128x32xf32>, vector<32x128xf32>, vector<128x128xf32> -> vector<128x128xf32>
    %cst_3 = arith.constant 1.000000e+00 : f32
    %3 = vector.broadcast %cst_3 : f32 to vector<1x128xf32>
    %cst_4 = arith.constant dense<0.000000e+00> : vector<1x128xf32>
    %4 = tpu.matmul %3, %2, %cst_4 {dimension_numbers = #tpu.dot_dimension_numbers<[1], [0], [0], [1], [0, 0, 1, 1], [], []>} : vector<1x128xf32>, vector<128x128xf32>, vector<1x128xf32> -> vector<1x128xf32>
    %5 = arith.mulf %2, %2 : vector<128x128xf32>
    %cst_5 = arith.constant dense<0.000000e+00> : vector<1x128xf32>
    %6 = tpu.matmul %3, %5, %cst_5 {dimension_numbers = #tpu.dot_dimension_numbers<[1], [0], [0], [1], [0, 0, 1, 1], [], []>} : vector<1x128xf32>, vector<128x128xf32>, vector<1x128xf32> -> vector<1x128xf32>
    %c0_6 = arith.constant 0 : index
    %c0_7 = arith.constant 0 : index
    %7 = vector.load %arg3[%c0_6, %c0_7] : memref<1x128xf32, #tpu.memory_space<vmem>>, vector<1x128xf32>
    %c0_8 = arith.constant 0 : index
    %c0_9 = arith.constant 0 : index
    %8 = vector.load %arg4[%c0_8, %c0_9] : memref<1x128xf32, #tpu.memory_space<vmem>>, vector<1x128xf32>
    %cst_10 = arith.constant 1.250000e-01 : f32
    %9 = vector.broadcast %cst_10 : f32 to vector<1x128xf32>
    %10 = arith.mulf %4, %9 : vector<1x128xf32>
    %cst_11 = arith.constant 1.250000e-01 : f32
    %11 = vector.broadcast %cst_11 : f32 to vector<1x128xf32>
    %12 = arith.mulf %6, %11 : vector<1x128xf32>
    %13 = arith.mulf %10, %10 : vector<1x128xf32>
    %14 = arith.subf %12, %13 : vector<1x128xf32>
    %cst_12 = arith.constant 0.000000e+00 : f32
    %15 = vector.broadcast %cst_12 : f32 to vector<1x128xf32>
    %16 = arith.maximumf %14, %15 : vector<1x128xf32>
    %cst_13 = arith.constant 9.99999974E-6 : f32
    %17 = vector.broadcast %cst_13 : f32 to vector<1x128xf32>
    %18 = arith.addf %16, %17 : vector<1x128xf32>
    %19 = math.rsqrt %18 : vector<1x128xf32>
    %20 = arith.mulf %7, %19 : vector<1x128xf32>
    %21 = arith.mulf %10, %20 : vector<1x128xf32>
    %22 = arith.subf %8, %21 : vector<1x128xf32>
    %23 = vector.broadcast %20 : vector<1x128xf32> to vector<128x128xf32>
    %24 = arith.mulf %2, %23 : vector<128x128xf32>
    %25 = vector.broadcast %22 : vector<1x128xf32> to vector<128x128xf32>
    %26 = arith.addf %24, %25 : vector<128x128xf32>
    %cst_14 = arith.constant 0.000000e+00 : f32
    %27 = vector.broadcast %cst_14 : f32 to vector<128x128xf32>
    %28 = arith.cmpf oge, %26, %27 : vector<128x128xf32>
    %cst_15 = arith.constant 2.000000e-01 : f32
    %29 = vector.broadcast %cst_15 : f32 to vector<128x128xf32>
    %30 = arith.mulf %29, %26 : vector<128x128xf32>
    %31 = arith.select %28, %26, %30 : vector<128x128xi1>, vector<128x128xf32>
    %c0_16 = arith.constant 0 : index
    %c0_17 = arith.constant 0 : index
    %32 = vector.load %arg5[%c0_16, %c0_17] : memref<1x128xf32, #tpu.memory_space<vmem>>, vector<1x128xf32>
    %cst_18 = arith.constant dense<0.000000e+00> : vector<1x128xf32>
    %33 = tpu.matmul %32, %31, %cst_18 {dimension_numbers = #tpu.dot_dimension_numbers<[1], [1], [0], [0], [0, 0, 1, 0], [], []>} : vector<1x128xf32>, vector<128x128xf32>, vector<1x128xf32> -> vector<1x128xf32>
    %c0_19 = arith.constant 0 : index
    %c0_20 = arith.constant 0 : index
    %34 = memref.load %arg6[%c0_19, %c0_20] : memref<1x1xf32, #tpu.memory_space<smem>>
    %35 = vector.broadcast %34 : f32 to vector<1x128xf32>
    %36 = arith.addf %33, %35 : vector<1x128xf32>
    %37 = arith.negf %36 : vector<1x128xf32>
    %38 = math.exp %37 : vector<1x128xf32>
    %cst_21 = arith.constant 1.000000e+00 : f32
    %39 = vector.broadcast %cst_21 : f32 to vector<1x128xf32>
    %40 = arith.addf %39, %38 : vector<1x128xf32>
    %41 = arith.divf %39, %40 : vector<1x128xf32>
    %c0_22 = arith.constant 0 : index
    %c0_23 = arith.constant 0 : index
    %42 = vector.load %arg7[%c0_22, %c0_23] : memref<1x128xf32, #tpu.memory_space<vmem>>, vector<1x128xf32>
    tpu.vector_store %arg7[%c0_22, %c0_23], %41 {strides = array<i32>} : memref<1x128xf32, #tpu.memory_space<vmem>>, vector<1x128xf32>,
    return
  }
  func.func @transform_0(%arg0: i32) -> (i32, i32) {
    %c0_i32 = arith.constant 0 : i32
    %c0_i32_0 = arith.constant 0 : i32
    %c0_i32_1 = arith.constant 0 : i32
    return %c0_i32, %c0_i32_0 : i32, i32
  }
  func.func @transform_1(%arg0: i32) -> (i32, i32) {
    %c0_i32 = arith.constant 0 : i32
    %c0_i32_0 = arith.constant 0 : i32
    %c0_i32_1 = arith.constant 0 : i32
    return %c0_i32, %c0_i32_0 : i32, i32
  }
  func.func @transform_2(%arg0: i32) -> (i32, i32) {
    %c0_i32 = arith.constant 0 : i32
    %c0_i32_0 = arith.constant 0 : i32
    %c0_i32_1 = arith.constant 0 : i32
    return %c0_i32, %c0_i32_0 : i32, i32
  }
  func.func @transform_3(%arg0: i32) -> (i32, i32) {
    %c0_i32 = arith.constant 0 : i32
    %c0_i32_0 = arith.constant 0 : i32
    %c0_i32_1 = arith.constant 0 : i32
    return %c0_i32, %c0_i32_0 : i32, i32
  }
  func.func @transform_4(%arg0: i32) -> (i32, i32) {
    %c0_i32 = arith.constant 0 : i32
    %c0_i32_0 = arith.constant 0 : i32
    %c0_i32_1 = arith.constant 0 : i32
    return %c0_i32, %c0_i32_0 : i32, i32
  }
  func.func @transform_5(%arg0: i32) -> (i32, i32) {
    %c0_i32 = arith.constant 0 : i32
    %c0_i32_0 = arith.constant 0 : i32
    %c0_i32_1 = arith.constant 0 : i32
    return %c0_i32, %c0_i32_0 : i32, i32
  }
  func.func @transform_6(%arg0: i32) -> (i32, i32) {
    %c0_i32 = arith.constant 0 : i32
    %c0_i32_0 = arith.constant 0 : i32
    %c0_i32_1 = arith.constant 0 : i32
    return %c0_i32, %c0_i32_0 : i32, i32
  }
}

</mosaic_0001>

<llo_original>
// kernel: tpu_custom_call.1
$region0: #{tpu_custom_call.1}
  #allocation0 [shape = 'u32[]', space=smem, size = 0x4, offset = 0x4, fixed_abs, tag = 'smem constant byte address 0x4 - core index']
  #allocation1 [shape = 'u32[144,128]{1,0:T(1,128)}', space=vmem, size = 0x12000, scoped, tag = 'internal scratch']
  #allocation2 [shape = 'f32[1,1]{1,0:T(1,128)S(6)}', space=smem, size = 0x200, scoped, tag = 'scoped memory for tpu_custom_call.1']
  %s0 = inlined_call_operand.vmem [shape: f32[128,32], index: 0, kind: input, shape index: {}]
  %s1 = inlined_call_operand.vmem [shape: f32[32,128], index: 1, kind: input, shape index: {}]
  %s2 = inlined_call_operand.vmem [shape: f32[1,128], index: 2, kind: input, shape index: {}]
  %s3 = inlined_call_operand.vmem [shape: f32[1,128], index: 3, kind: input, shape index: {}]
  %s4 = inlined_call_operand.vmem [shape: f32[1,128], index: 4, kind: input, shape index: {}]
  %s5 = inlined_call_operand.<no memory space> [shape: f32[1,1], index: 5, kind: input, shape index: {}]
  %s6 = inlined_call_operand.hbm [shape: f32[1,128], index: 6, kind: output, shape index: {}]
  %s7 = sld [smem:[#allocation0]]
  $region34: #{tpu_custom_call.1} parent=0
    _
  %s9 = ssub.s32 1, %s7
  %s10 = scalar_select 0, %s9, %s7
  %11 = sst [smem:[#allocation2]] %s5
  $region1: #{tpu_custom_call.1} parent=0
    #allocation3 [shape = 'u8[512]{0}', space=vmem, size = 0x400, scoped, tag = 'output window, operand 0, single buffered']
    #allocation4 [shape = 's32[1]{0}', space=sflag, size = 0x4, scoped, tag = 'scoped memory for tpu_custom_call.1']
    %12 = vsyncpa [#allocation4], 0
    // Predicated region
    $region2: #{tpu_custom_call.1} parent=1 // pred_check
      _
    $region3: #{tpu_custom_call.1} parent=1 // pred_check_branch
      %14 = sbr.rel (0) target = $region5
    $region4: #{tpu_custom_call.1} parent=1 // pred_region
      _
    $region5: #{tpu_custom_call.1} parent=1 // pred_fallthru
      _
    // Predicated region
    $region6: #{tpu_custom_call.1} parent=1 // pred_check
      _
    $region7: #{tpu_custom_call.1} parent=1 // pred_check_branch
      %16 = sbr.rel (0) target = $region9
    $region8: #{tpu_custom_call.1} parent=1 // pred_region
      _
    $region9: #{tpu_custom_call.1} parent=1 // pred_fallthru
      _
    // Predicated region
    $region10: #{tpu_custom_call.1} parent=1 // pred_check
      _
    $region11: #{tpu_custom_call.1} parent=1 // pred_check_branch
      %18 = sbr.rel (0) target = $region13
    $region12: #{tpu_custom_call.1} parent=1 // pred_region
      _
    $region13: #{tpu_custom_call.1} parent=1 // pred_fallthru
      _
    // Predicated region
    $region14: #{tpu_custom_call.1} parent=1 // pred_check
      _
    $region15: #{tpu_custom_call.1} parent=1 // pred_check_branch
      %20 = sbr.rel (0) target = $region17
    $region16: #{tpu_custom_call.1} parent=1 // pred_region
      _
    $region17: #{tpu_custom_call.1} parent=1 // pred_fallthru
      _
    // Predicated region
    $region18: #{tpu_custom_call.1} parent=1 // pred_check
      _
    $region19: #{tpu_custom_call.1} parent=1 // pred_check_branch
      %22 = sbr.rel (0) target = $region21
    $region20: #{tpu_custom_call.1} parent=1 // pred_region
      _
    $region21: #{tpu_custom_call.1} parent=1 // pred_fallthru
      _
    // Predicated region
    $region22: #{tpu_custom_call.1} parent=1 // pred_check
      _
    $region23: #{tpu_custom_call.1} parent=1 // pred_check_branch
      %24 = sbr.rel (0) target = $region25
    $region24: #{tpu_custom_call.1} parent=1 // pred_region
      _
    $region25: #{tpu_custom_call.1} parent=1 // pred_fallthru
      _
    %v25 = vld [vmem:[%s0] sm:$0xff]
    %v26 = vld [vmem:[%s0 + $0x8] sm:$0xff]
    %v27 = vld [vmem:[%s0 + $0x10] sm:$0xff]
    %v28 = vld [vmem:[%s0 + $0x18] sm:$0xff]
    %v29 = vld [vmem:[%s0 + $0x20] sm:$0xff]
    %v30 = vld [vmem:[%s0 + $0x28] sm:$0xff]
    %v31 = vld [vmem:[%s0 + $0x30] sm:$0xff]
    %v32 = vld [vmem:[%s0 + $0x38] sm:$0xff]
    %v33 = vld [vmem:[%s0 + $0x40] sm:$0xff]
    %v34 = vld [vmem:[%s0 + $0x48] sm:$0xff]
    %v35 = vld [vmem:[%s0 + $0x50] sm:$0xff]
    %v36 = vld [vmem:[%s0 + $0x58] sm:$0xff]
    %v37 = vld [vmem:[%s0 + $0x60] sm:$0xff]
    %v38 = vld [vmem:[%s0 + $0x68] sm:$0xff]
    %v39 = vld [vmem:[%s0 + $0x70] sm:$0xff]
    %v40 = vld [vmem:[%s0 + $0x78] sm:$0xff]
    %v41 = vld [vmem:[%s1] sm:$0xff]
    %v42 = vld [vmem:[%s1 + $0x8] sm:$0xff]
    %v43 = vld [vmem:[%s1 + $0x10] sm:$0xff]
    %v44 = vld [vmem:[%s1 + $0x18] sm:$0xff]
    %vm45 = vcmask 261120
    %v47 = vsel %vm45, %v25, 0
    %v50 = vsel %vm45, %v26, 0
    %v53 = vsel %vm45, %v27, 0
    %v56 = vsel %vm45, %v28, 0
    %v59 = vsel %vm45, %v29, 0
    %v62 = vsel %vm45, %v30, 0
    %v65 = vsel %vm45, %v31, 0
    %v68 = vsel %vm45, %v32, 0
    %v71 = vsel %vm45, %v33, 0
    %v74 = vsel %vm45, %v34, 0
    %v77 = vsel %vm45, %v35, 0
    %v80 = vsel %vm45, %v36, 0
    %v83 = vsel %vm45, %v37, 0
    %v86 = vsel %vm45, %v38, 0
    %v89 = vsel %vm45, %v39, 0
    %v92 = vsel %vm45, %v40, 0
    %94 = vmatprep.subr.mxu0 0.0
    %95 = vmatpush1.msra.mxu0 %v41
    %96 = vmatprep.subr.mxu0 0.0
    %97 = vmatpush1.msra.mxu0 %v42
    %98 = vmatprep.subr.mxu0 0.0
    %99 = vmatpush1.msra.mxu0 %v43
    %100 = vmatprep.subr.mxu0 0.0
    %101 = vmatpush1.msra.mxu0 %v44
    %102 = vmatprep.subr.mxu0 0.0
    %103 = vmatpush1.msra.mxu0 0.0
    %104 = vmatprep.subr.mxu0 0.0
    %105 = vmatpush1.msra.mxu0 0.0
    %106 = vmatprep.subr.mxu0 0.0
    %107 = vmatpush1.msra.mxu0 0.0
    %108 = vmatprep.subr.mxu0 0.0
    %109 = vmatpush1.msra.mxu0 0.0
    %110 = vmatprep.subr.mxu0 0.0
    %111 = vmatpush1.msra.mxu0 0.0
    %112 = vmatprep.subr.mxu0 0.0
    %113 = vmatpush1.msra.mxu0 0.0
    %114 = vmatprep.subr.mxu0 0.0
    %115 = vmatpush1.msra.mxu0 0.0
    %116 = vmatprep.subr.mxu0 0.0
    %117 = vmatpush1.msra.mxu0 0.0
    %118 = vmatprep.subr.mxu0 0.0
    %119 = vmatpush1.msra.mxu0 0.0
    %120 = vmatprep.subr.mxu0 0.0
    %121 = vmatpush1.msra.mxu0 0.0
    %122 = vmatprep.subr.mxu0 0.0
    %123 = vmatpush1.msra.mxu0 0.0
    %124 = vmatprep.subr.mxu0 0.0
    %125 = vmatpush1.msra.mxu0 0.0
    %126 = vmatprep.subr.mxu0 0.0
    %127 = vmatpush1.msra.mxu0 0.0
    %128 = vmatprep.subr.mxu0 0.0
    %129 = vmatpush1.msra.mxu0 0.0
    %130 = vmatprep.subr.mxu0 0.0
    %131 = vmatpush1.msra.mxu0 0.0
    %132 = vmatprep.subr.mxu0 0.0
    %133 = vmatpush1.msra.mxu0 0.0
    %134 = vmatprep.subr.mxu0 0.0
    %135 = vmatpush1.msra.mxu0 0.0
    %136 = vmatprep.subr.mxu0 0.0
    %137 = vmatpush1.msra.mxu0 0.0
    %138 = vmatprep.subr.mxu0 0.0
    %139 = vmatpush1.msra.mxu0 0.0
    %140 = vmatprep.subr.mxu0 0.0
    %141 = vmatpush1.msra.mxu0 0.0
    %142 = vmatprep.subr.mxu0 0.0
    %143 = vmatpush1.msra.mxu0 0.0
    %144 = vmatprep.subr.mxu0 0.0
    %145 = vmatpush1.msra.mxu0 0.0
    %146 = vmatprep.subr.mxu0 0.0
    %147 = vmatpush1.msra.mxu0 0.0
    %148 = vmatprep.subr.mxu0 0.0
    %149 = vmatpush1.msra.mxu0 0.0
    %150 = vmatprep.subr.mxu0 0.0
    %151 = vmatpush1.msra.mxu0 0.0
    %152 = vmatprep.subr.mxu0 0.0
    %153 = vmatpush1.msra.mxu0 0.0
    %154 = vmatprep.subr.mxu0 0.0
    %155 = vmatpush1.msra.mxu0 0.0
    %156 = vmatprep.subr.mxu0 0.0
    %157 = vmatpush1.msra.mxu0 0.0
    %158 = vmatprep.mubr.f32.mxu0 0.0
    %159 = vmatmul.mubr.f32.gmra.mrb[0].mxu0 %v47
    %v160 = vpop.f32.mrb[0].mxu0
    %v161 = vadd.f32 0.0, %v160
    %v162 = vpop.f32.mrb[0].mxu0
    %163 = vmatprep.mubr.f32.mxu0 0.0
    %164 = vmatmul.mubr.f32.gmra.mrb[0].mxu0 %v50
    %v165 = vpop.f32.mrb[0].mxu0
    %v166 = vadd.f32 0.0, %v165
    %v167 = vpop.f32.mrb[0].mxu0
    %168 = vmatprep.mubr.f32.mxu0 0.0
    %169 = vmatmul.mubr.f32.gmra.mrb[0].mxu0 %v53
    %v170 = vpop.f32.mrb[0].mxu0
    %v171 = vadd.f32 0.0, %v170
    %v172 = vpop.f32.mrb[0].mxu0
    %173 = vmatprep.mubr.f32.mxu0 0.0
    %174 = vmatmul.mubr.f32.gmra.mrb[0].mxu0 %v56
    %v175 = vpop.f32.mrb[0].mxu0
    %v176 = vadd.f32 0.0, %v175
    %v177 = vpop.f32.mrb[0].mxu0
    %178 = vmatprep.mubr.f32.mxu0 0.0
    %179 = vmatmul.mubr.f32.gmra.mrb[0].mxu0 %v59
    %v180 = vpop.f32.mrb[0].mxu0
    %v181 = vadd.f32 0.0, %v180
    %v182 = vpop.f32.mrb[0].mxu0
    %183 = vmatprep.mubr.f32.mxu0 0.0
    %184 = vmatmul.mubr.f32.gmra.mrb[0].mxu0 %v62
    %v185 = vpop.f32.mrb[0].mxu0
    %v186 = vadd.f32 0.0, %v185
    %v187 = vpop.f32.mrb[0].mxu0
    %188 = vmatprep.mubr.f32.mxu0 0.0
    %189 = vmatmul.mubr.f32.gmra.mrb[0].mxu0 %v65
    %v190 = vpop.f32.mrb[0].mxu0
    %v191 = vadd.f32 0.0, %v190
    %v192 = vpop.f32.mrb[0].mxu0
    %193 = vmatprep.mubr.f32.mxu0 0.0
    %194 = vmatmul.mubr.f32.gmra.mrb[0].mxu0 %v68
    %v195 = vpop.f32.mrb[0].mxu0
    %v196 = vadd.f32 0.0, %v195
    %v197 = vpop.f32.mrb[0].mxu0
    %198 = vmatprep.mubr.f32.mxu0 0.0
    %199 = vmatmul.mubr.f32.gmra.mrb[0].mxu0 %v71
    %v200 = vpop.f32.mrb[0].mxu0
    %v201 = vadd.f32 0.0, %v200
    %v202 = vpop.f32.mrb[0].mxu0
    %203 = vmatprep.mubr.f32.mxu0 0.0
    %204 = vmatmul.mubr.f32.gmra.mrb[0].mxu0 %v74
    %v205 = vpop.f32.mrb[0].mxu0
    %v206 = vadd.f32 0.0, %v205
    %v207 = vpop.f32.mrb[0].mxu0
    %208 = vmatprep.mubr.f32.mxu0 0.0
    %209 = vmatmul.mubr.f32.gmra.mrb[0].mxu0 %v77
    %v210 = vpop.f32.mrb[0].mxu0
    %v211 = vadd.f32 0.0, %v210
    %v212 = vpop.f32.mrb[0].mxu0
    %213 = vmatprep.mubr.f32.mxu0 0.0
    %214 = vmatmul.mubr.f32.gmra.mrb[0].mxu0 %v80
    %v215 = vpop.f32.mrb[0].mxu0
    %v216 = vadd.f32 0.0, %v215
    %v217 = vpop.f32.mrb[0].mxu0
    %218 = vmatprep.mubr.f32.mxu0 0.0
    %219 = vmatmul.mubr.f32.gmra.mrb[0].mxu0 %v83
    %v220 = vpop.f32.mrb[0].mxu0
    %v221 = vadd.f32 0.0, %v220
    %v222 = vpop.f32.mrb[0].mxu0
    %223 = vmatprep.mubr.f32.mxu0 0.0
    %224 = vmatmul.mubr.f32.gmra.mrb[0].mxu0 %v86
    %v225 = vpop.f32.mrb[0].mxu0
    %v226 = vadd.f32 0.0, %v225
    %v227 = vpop.f32.mrb[0].mxu0
    %228 = vmatprep.mubr.f32.mxu0 0.0
    %229 = vmatmul.mubr.f32.gmra.mrb[0].mxu0 %v89
    %v230 = vpop.f32.mrb[0].mxu0
    %v231 = vadd.f32 0.0, %v230
    %v232 = vpop.f32.mrb[0].mxu0
    %233 = vmatprep.mubr.f32.mxu0 0.0
    %234 = vmatmul.mubr.f32.gmra.mrb[0].mxu0 %v92
    %v235 = vpop.f32.mrb[0].mxu0
    %v236 = vadd.f32 0.0, %v235
    %v237 = vpop.f32.mrb[0].mxu0
    %238 = vdwg.mxu0
    %239 = vmatprep.subr.mxu0 0.0
    %240 = vmatpush1.msra.mxu0 %v161
    %241 = vmatprep.subr.mxu0 0.0
    %242 = vmatpush1.msra.mxu0 %v166
    %243 = vmatprep.subr.mxu0 0.0
    %244 = vmatpush1.msra.mxu0 %v171
    %245 = vmatprep.subr.mxu0 0.0
    %246 = vmatpush1.msra.mxu0 %v176
    %247 = vmatprep.subr.mxu0 0.0
    %248 = vmatpush1.msra.mxu0 %v181
    %249 = vmatprep.subr.mxu0 0.0
    %250 = vmatpush1.msra.mxu0 %v186
    %251 = vmatprep.subr.mxu0 0.0
    %252 = vmatpush1.msra.mxu0 %v191
    %253 = vmatprep.subr.mxu0 0.0
    %254 = vmatpush1.msra.mxu0 %v196
    %255 = vmatprep.subr.mxu0 0.0
    %256 = vmatpush1.msra.mxu0 %v201
    %257 = vmatprep.subr.mxu0 0.0
    %258 = vmatpush1.msra.mxu0 %v206
    %259 = vmatprep.subr.mxu0 0.0
    %260 = vmatpush1.msra.mxu0 %v211
    %261 = vmatprep.subr.mxu0 0.0
    %262 = vmatpush1.msra.mxu0 %v216
    %263 = vmatprep.subr.mxu0 0.0
    %264 = vmatpush1.msra.mxu0 %v221
    %265 = vmatprep.subr.mxu0 0.0
    %266 = vmatpush1.msra.mxu0 %v226
    %267 = vmatprep.subr.mxu0 0.0
    %268 = vmatpush1.msra.mxu0 %v231
    %269 = vmatprep.subr.mxu0 0.0
    %270 = vmatpush1.msra.mxu0 %v236
    %271 = vmatprep.subr.mxu0 0.0
    %272 = vmatpush1.msra.mxu0 0.0
    %273 = vmatprep.subr.mxu0 0.0
    %274 = vmatpush1.msra.mxu0 0.0
    %275 = vmatprep.subr.mxu0 0.0
    %276 = vmatpush1.msra.mxu0 0.0
    %277 = vmatprep.subr.mxu0 0.0
    %278 = vmatpush1.msra.mxu0 0.0
    %279 = vmatprep.subr.mxu0 0.0
    %280 = vmatpush1.msra.mxu0 0.0
    %281 = vmatprep.subr.mxu0 0.0
    %282 = vmatpush1.msra.mxu0 0.0
    %283 = vmatprep.subr.mxu0 0.0
    %284 = vmatpush1.msra.mxu0 0.0
    %285 = vmatprep.subr.mxu0 0.0
    %286 = vmatpush1.msra.mxu0 0.0
    %287 = vmatprep.subr.mxu0 0.0
    %288 = vmatpush1.msra.mxu0 0.0
    %289 = vmatprep.subr.mxu0 0.0
    %290 = vmatpush1.msra.mxu0 0.0
    %291 = vmatprep.subr.mxu0 0.0
    %292 = vmatpush1.msra.mxu0 0.0
    %293 = vmatprep.subr.mxu0 0.0
    %294 = vmatpush1.msra.mxu0 0.0
    %295 = vmatprep.subr.mxu0 0.0
    %296 = vmatpush1.msra.mxu0 0.0
    %297 = vmatprep.subr.mxu0 0.0
    %298 = vmatpush1.msra.mxu0 0.0
    %299 = vmatprep.subr.mxu0 0.0
    %300 = vmatpush1.msra.mxu0 0.0
    %301 = vmatprep.subr.mxu0 0.0
    %302 = vmatpush1.msra.mxu0 0.0
    %303 = vmatprep.mubr.f32.mxu0 0.0
    %304 = vmatmul.mubr.f32.gmra.mrb[0].mxu0 1.0
    %v305 = vpop.f32.mrb[0].mxu0
    %v306 = vadd.f32 0.0, %v305
    %v307 = vpop.f32.mrb[0].mxu0
    %308 = vdwg.mxu0
    %v309 = vmul.f32 %v161, %v161
    %v310 = vmul.f32 %v166, %v166
    %v311 = vmul.f32 %v171, %v171
    %v312 = vmul.f32 %v176, %v176
    %v313 = vmul.f32 %v181, %v181
    %v314 = vmul.f32 %v186, %v186
    %v315 = vmul.f32 %v191, %v191
    %v316 = vmul.f32 %v196, %v196
    %v317 = vmul.f32 %v201, %v201
    %v318 = vmul.f32 %v206, %v206
    %v319 = vmul.f32 %v211, %v211
    %v320 = vmul.f32 %v216, %v216
    %v321 = vmul.f32 %v221, %v221
    %v322 = vmul.f32 %v226, %v226
    %v323 = vmul.f32 %v231, %v231
    %v324 = vmul.f32 %v236, %v236
    %325 = vmatprep.subr.mxu0 0.0
    %326 = vmatpush1.msra.mxu0 %v309
    %327 = vmatprep.subr.mxu0 0.0
    %328 = vmatpush1.msra.mxu0 %v310
    %329 = vmatprep.subr.mxu0 0.0
    %330 = vmatpush1.msra.mxu0 %v311
    %331 = vmatprep.subr.mxu0 0.0
    %332 = vmatpush1.msra.mxu0 %v312
    %333 = vmatprep.subr.mxu0 0.0
    %334 = vmatpush1.msra.mxu0 %v313
    %335 = vmatprep.subr.mxu0 0.0
    %336 = vmatpush1.msra.mxu0 %v314
    %337 = vmatprep.subr.mxu0 0.0
    %338 = vmatpush1.msra.mxu0 %v315
    %339 = vmatprep.subr.mxu0 0.0
    %340 = vmatpush1.msra.mxu0 %v316
    %341 = vmatprep.subr.mxu0 0.0
    %342 = vmatpush1.msra.mxu0 %v317
    %343 = vmatprep.subr.mxu0 0.0
    %344 = vmatpush1.msra.mxu0 %v318
    %345 = vmatprep.subr.mxu0 0.0
    %346 = vmatpush1.msra.mxu0 %v319
    %347 = vmatprep.subr.mxu0 0.0
    %348 = vmatpush1.msra.mxu0 %v320
    %349 = vmatprep.subr.mxu0 0.0
    %350 = vmatpush1.msra.mxu0 %v321
    %351 = vmatprep.subr.mxu0 0.0
    %352 = vmatpush1.msra.mxu0 %v322
    %353 = vmatprep.subr.mxu0 0.0
    %354 = vmatpush1.msra.mxu0 %v323
    %355 = vmatprep.subr.mxu0 0.0
    %356 = vmatpush1.msra.mxu0 %v324
    %357 = vmatprep.subr.mxu0 0.0
    %358 = vmatpush1.msra.mxu0 0.0
    %359 = vmatprep.subr.mxu0 0.0
    %360 = vmatpush1.msra.mxu0 0.0
    %361 = vmatprep.subr.mxu0 0.0
    %362 = vmatpush1.msra.mxu0 0.0
    %363 = vmatprep.subr.mxu0 0.0
    %364 = vmatpush1.msra.mxu0 0.0
    %365 = vmatprep.subr.mxu0 0.0
    %366 = vmatpush1.msra.mxu0 0.0
    %367 = vmatprep.subr.mxu0 0.0
    %368 = vmatpush1.msra.mxu0 0.0
    %369 = vmatprep.subr.mxu0 0.0
    %370 = vmatpush1.msra.mxu0 0.0
    %371 = vmatprep.subr.mxu0 0.0
    %372 = vmatpush1.msra.mxu0 0.0
    %373 = vmatprep.subr.mxu0 0.0
    %374 = vmatpush1.msra.mxu0 0.0
    %375 = vmatprep.subr.mxu0 0.0
    %376 = vmatpush1.msra.mxu0 0.0
    %377 = vmatprep.subr.mxu0 0.0
    %378 = vmatpush1.msra.mxu0 0.0
    %379 = vmatprep.subr.mxu0 0.0
    %380 = vmatpush1.msra.mxu0 0.0
    %381 = vmatprep.subr.mxu0 0.0
    %382 = vmatpush1.msra.mxu0 0.0
    %383 = vmatprep.subr.mxu0 0.0
    %384 = vmatpush1.msra.mxu0 0.0
    %385 = vmatprep.subr.mxu0 0.0
    %386 = vmatpush1.msra.mxu0 0.0
    %387 = vmatprep.subr.mxu0 0.0
    %388 = vmatpush1.msra.mxu0 0.0
    %389 = vmatprep.mubr.f32.mxu0 0.0
    %390 = vmatmul.mubr.f32.gmra.mrb[0].mxu0 1.0
    %v391 = vpop.f32.mrb[0].mxu0
    %v392 = vadd.f32 0.0, %v391
    %v393 = vpop.f32.mrb[0].mxu0
    %394 = vdwg.mxu0
    %v395 = vld [vmem:[%s2] sm:$0x1]
    %v396 = vld [vmem:[%s3] sm:$0x1]
    %v397 = vmul.f32 %v306, 0.125
    %v398 = vmul.f32 %v392, 0.125
    %v399 = vmul.f32 %v397, %v397
    %v400 = vsub.f32 %v398, %v399
    %v401 = vmax.f32 %v400, 0.0
    %v402 = vadd.f32 %v401, 1e-05
    %v403 = vrsqrt.pop %v402
    %v404 = vmul.f32 %v395, %v403
    %v405 = vmul.f32 %v397, %v404
    %v406 = vsub.f32 %v396, %v405
    %v408 = vlaneseq
    %v409 = vshrl.u32 %v408, 7
    %v410 = vsub.s32 0, %v409
    %v411 = vrot.slane %v404, %v410
    %v413 = vmul.f32 %v161, %v411
    %v414 = vmul.f32 %v166, %v411
    %v415 = vmul.f32 %v171, %v411
    %v416 = vmul.f32 %v176, %v411
    %v417 = vmul.f32 %v181, %v411
    %v418 = vmul.f32 %v186, %v411
    %v419 = vmul.f32 %v191, %v411
    %v420 = vmul.f32 %v196, %v411
    %v421 = vmul.f32 %v201, %v411
    %v422 = vmul.f32 %v206, %v411
    %v423 = vmul.f32 %v211, %v411
    %v424 = vmul.f32 %v216, %v411
    %v425 = vmul.f32 %v221, %v411
    %v426 = vmul.f32 %v226, %v411
    %v427 = vmul.f32 %v231, %v411
    %v428 = vmul.f32 %v236, %v411
    %v430 = vlaneseq
    %v431 = vshrl.u32 %v430, 7
    %v432 = vsub.s32 0, %v431
    %v433 = vrot.slane %v406, %v432
    %v435 = vadd.f32 %v413, %v433
    %v436 = vadd.f32 %v414, %v433
    %v437 = vadd.f32 %v415, %v433
    %v438 = vadd.f32 %v416, %v433
    %v439 = vadd.f32 %v417, %v433
    %v440 = vadd.f32 %v418, %v433
    %v441 = vadd.f32 %v419, %v433
    %v442 = vadd.f32 %v420, %v433
    %v443 = vadd.f32 %v421, %v433
    %v444 = vadd.f32 %v422, %v433
    %v445 = vadd.f32 %v423, %v433
    %v446 = vadd.f32 %v424, %v433
    %v447 = vadd.f32 %v425, %v433
    %v448 = vadd.f32 %v426, %v433
    %v449 = vadd.f32 %v427, %v433
    %v450 = vadd.f32 %v428, %v433
    %vm451 = vcmp.ge.f32.partialorder %v435, 0.0
    %vm452 = vcmp.ge.f32.partialorder %v436, 0.0
    %vm453 = vcmp.ge.f32.partialorder %v437, 0.0
    %vm454 = vcmp.ge.f32.partialorder %v438, 0.0
    %vm455 = vcmp.ge.f32.partialorder %v439, 0.0
    %vm456 = vcmp.ge.f32.partialorder %v440, 0.0
    %vm457 = vcmp.ge.f32.partialorder %v441, 0.0
    %vm458 = vcmp.ge.f32.partialorder %v442, 0.0
    %vm459 = vcmp.ge.f32.partialorder %v443, 0.0
    %vm460 = vcmp.ge.f32.partialorder %v444, 0.0
    %vm461 = vcmp.ge.f32.partialorder %v445, 0.0
    %vm462 = vcmp.ge.f32.partialorder %v446, 0.0
    %vm463 = vcmp.ge.f32.partialorder %v447, 0.0
    %vm464 = vcmp.ge.f32.partialorder %v448, 0.0
    %vm465 = vcmp.ge.f32.partialorder %v449, 0.0
    %vm466 = vcmp.ge.f32.partialorder %v450, 0.0
    %v467 = vmul.f32 %v435, 0.2
    %v468 = vmul.f32 %v436, 0.2
    %v469 = vmul.f32 %v437, 0.2
    %v470 = vmul.f32 %v438, 0.2
    %v471 = vmul.f32 %v439, 0.2
    %v472 = vmul.f32 %v440, 0.2
    %v473 = vmul.f32 %v441, 0.2
    %v474 = vmul.f32 %v442, 0.2
    %v475 = vmul.f32 %v443, 0.2
    %v476 = vmul.f32 %v444, 0.2
    %v477 = vmul.f32 %v445, 0.2
    %v478 = vmul.f32 %v446, 0.2
    %v479 = vmul.f32 %v447, 0.2
    %v480 = vmul.f32 %v448, 0.2
    %v481 = vmul.f32 %v449, 0.2
    %v482 = vmul.f32 %v450, 0.2
    %v483 = vsel %vm451, %v435, %v467
    %v484 = vsel %vm452, %v436, %v468
    %v485 = vsel %vm453, %v437, %v469
    %v486 = vsel %vm454, %v438, %v470
    %v487 = vsel %vm455, %v439, %v471
    %v488 = vsel %vm456, %v440, %v472
    %v489 = vsel %vm457, %v441, %v473
    %v490 = vsel %vm458, %v442, %v474
    %v491 = vsel %vm459, %v443, %v475
    %v492 = vsel %vm460, %v444, %v476
    %v493 = vsel %vm461, %v445, %v477
    %v494 = vsel %vm462, %v446, %v478
    %v495 = vsel %vm463, %v447, %v479
    %v496 = vsel %vm464, %v448, %v480
    %v497 = vsel %vm465, %v449, %v481
    %v498 = vsel %vm466, %v450, %v482
    %v499 = vld [vmem:[%s4] sm:$0x1]
    %s500 = sld [smem:[#allocation2]]
    %v501 = vstv %s500
    %502 = vmatprep.subr.mxu0 0.0
    %503 = vmatpush1.xpose.msra.mxu0 %v483
    %504 = vmatprep.subr.mxu0 0.0
    %505 = vmatpush1.xpose.msra.mxu0 %v484
    %506 = vmatprep.subr.mxu0 0.0
    %507 = vmatpush1.xpose.msra.mxu0 %v485
    %508 = vmatprep.subr.mxu0 0.0
    %509 = vmatpush1.xpose.msra.mxu0 %v486
    %510 = vmatprep.subr.mxu0 0.0
    %511 = vmatpush1.xpose.msra.mxu0 %v487
    %512 = vmatprep.subr.mxu0 0.0
    %513 = vmatpush1.xpose.msra.mxu0 %v488
    %514 = vmatprep.subr.mxu0 0.0
    %515 = vmatpush1.xpose.msra.mxu0 %v489
    %516 = vmatprep.subr.mxu0 0.0
    %517 = vmatpush1.xpose.msra.mxu0 %v490
    %518 = vmatprep.subr.mxu0 0.0
    %519 = vmatpush1.xpose.msra.mxu0 %v491
    %520 = vmatprep.subr.mxu0 0.0
    %521 = vmatpush1.xpose.msra.mxu0 %v492
    %522 = vmatprep.subr.mxu0 0.0
    %523 = vmatpush1.xpose.msra.mxu0 %v493
    %524 = vmatprep.subr.mxu0 0.0
    %525 = vmatpush1.xpose.msra.mxu0 %v494
    %526 = vmatprep.subr.mxu0 0.0
    %527 = vmatpush1.xpose.msra.mxu0 %v495
    %528 = vmatprep.subr.mxu0 0.0
    %529 = vmatpush1.xpose.msra.mxu0 %v496
    %530 = vmatprep.subr.mxu0 0.0
    %531 = vmatpush1.xpose.msra.mxu0 %v497
    %532 = vmatprep.subr.mxu0 0.0
    %533 = vmatpush1.xpose.msra.mxu0 %v498
    %534 = vmatprep.subr.mxu0 0.0
    %535 = vmatpush1.xpose.msra.mxu0 0.0
    %536 = vmatprep.subr.mxu0 0.0
    %537 = vmatpush1.xpose.msra.mxu0 0.0
    %538 = vmatprep.subr.mxu0 0.0
    %539 = vmatpush1.xpose.msra.mxu0 0.0
    %540 = vmatprep.subr.mxu0 0.0
    %541 = vmatpush1.xpose.msra.mxu0 0.0
    %542 = vmatprep.subr.mxu0 0.0
    %543 = vmatpush1.xpose.msra.mxu0 0.0
    %544 = vmatprep.subr.mxu0 0.0
    %545 = vmatpush1.xpose.msra.mxu0 0.0
    %546 = vmatprep.subr.mxu0 0.0
    %547 = vmatpush1.xpose.msra.mxu0 0.0
    %548 = vmatprep.subr.mxu0 0.0
    %549 = vmatpush1.xpose.msra.mxu0 0.0
    %550 = vmatprep.subr.mxu0 0.0
    %551 = vmatpush1.xpose.msra.mxu0 0.0
    %552 = vmatprep.subr.mxu0 0.0
    %553 = vmatpush1.xpose.msra.mxu0 0.0
    %554 = vmatprep.subr.mxu0 0.0
    %555 = vmatpush1.xpose.msra.mxu0 0.0
    %556 = vmatprep.subr.mxu0 0.0
    %557 = vmatpush1.xpose.msra.mxu0 0.0
    %558 = vmatprep.subr.mxu0 0.0
    %559 = vmatpush1.xpose.msra.mxu0 0.0
    %560 = vmatprep.subr.mxu0 0.0
    %561 = vmatpush1.xpose.msra.mxu0 0.0
    %562 = vmatprep.subr.mxu0 0.0
    %563 = vmatpush1.xpose.msra.mxu0 0.0
    %564 = vmatprep.subr.mxu0 0.0
    %565 = vmatpush1.xpose.msra.mxu0 0.0
    %566 = vmatprep.mubr.f32.mxu0 0.0
    %567 = vmatmul.mubr.f32.gmra.mrb[0].mxu0 %v499
    %v568 = vpop.f32.mrb[0].mxu0
    %v569 = vadd.f32 %v501, %v568
    %v570 = vpop.f32.mrb[0].mxu0
    %571 = vdwg.mxu0
    %v572 = vxor.u32 %v569, 2147483648
    %v573 = vmul.f32 %v572, 1.442695
    %v574 = vpow.pop %v573
    %v575 = vadd.f32 %v574, 1.0
    %v576 = vrcp.pop %v575
    %v577 = vmul.f32 1.0, %v576
    %578 = vst [vmem:[#allocation3] sm:$0x1] %v577
    // Predicated region
    $region26: #{tpu_custom_call.1} parent=1 // pred_check
      _
    $region27: #{tpu_custom_call.1} parent=1 // pred_check_branch
      %580 = sbr.rel (0) target = $region29
    $region28: #{tpu_custom_call.1} parent=1 // pred_region
      %s582 = ssub.s32 16, 16
      %583 = vsyncadd [#allocation4], %s582
      %s585 = sshll.u32 [#allocation3], 4
      %s586 = int_to_ptr.vmem [resolvable:$true] %s585
      %588 = dma.vmem_to_hbm [thread:$0]  %s586, 16, %s6, [#allocation4]
    $region29: #{tpu_custom_call.1} parent=1 // pred_fallthru
      _
    // Predicated region
    $region30: #{tpu_custom_call.1} parent=1 // pred_check
      _
    $region31: #{tpu_custom_call.1} parent=1 // pred_check_branch
      %590 = sbr.rel (0) target = $region33
    $region32: #{tpu_custom_call.1} parent=1 // pred_region
      %591 = dma.done [#allocation4], 16
    $region33: #{tpu_custom_call.1} parent=1 // pred_fallthru
      _
    %592 = vsyncpa [#allocation4], 1

</llo_original>
